<compile_context>
chip_gen: v7x
topology: tpu7x:2x2x1
jax: 0.10.0
libtpu: 0.0.40
codegen_flags: <defaults>
</compile_context>

<pallas_src>
import functools

import jax
import jax.numpy as jnp
from jax import lax
from jax.experimental import pallas as pl
from jax.experimental.pallas import tpu as pltpu

_NEG_PAD = -1e30  # logit value for padded classes / rows (exp() underflows to 0)


def _round_up(x, m):
    return ((x + m - 1) // m) * m


def _sublane(dtype):
    return {4: 8, 2: 16, 1: 32}.get(jnp.dtype(dtype).itemsize, 8)


def _distill_partial_kernel(student_ref, teacher_ref, targets_ref, cw_ref, out_ref,
                            *, temperature, gamma, num_rows_total, num_classes,
                            block_rows, mask_rows, mask_cols):
    s = student_ref[...].astype(jnp.float32)     # (TB, Cp) student logits
    t = teacher_ref[...].astype(jnp.float32)     # (TB, Cp) teacher logits
    tgt = targets_ref[...]                       # (TB, 1) int32 class indices
    cw = cw_ref[...]                             # (1, Cp) per-class weights (f32)

    TB, Cp = s.shape
    inv_t = 1.0 / temperature

    # Class / batch padding masks (statically elided when there is no padding).
    col = lax.broadcasted_iota(jnp.int32, (TB, Cp), 1)
    if mask_rows:
        row_ids = (lax.broadcasted_iota(jnp.int32, (TB, 1), 0)
                   + pl.program_id(0) * block_rows)
        row_valid = row_ids < num_rows_total                         # (TB, 1)

    # ---- shared student row-max (max(s/T) == max(s)/T for T > 0) -------------
    s_max = jnp.max(s, axis=1, keepdims=True)                        # (TB, 1)
    s_z = s - s_max                                                  # (TB, Cp)

    # ---- Focal loss partial (FocalLoss alpha=class_weights, mean over B) -----
    # logpt = s[target] - logZ  (no full log-prob matrix materialized).
    s_lse = jnp.log(jnp.sum(jnp.exp(s_z), axis=1, keepdims=True))    # (TB, 1) == logZ - max
    onehot = col == tgt                                              # (TB, Cp)
    s_tgt = jnp.sum(jnp.where(onehot, s_z, 0.0), axis=1, keepdims=True)   # (TB, 1)
    at = jnp.sum(jnp.where(onehot, cw, 0.0), axis=1, keepdims=True)       # (TB, 1)
    logpt = s_tgt - s_lse
    pt = jnp.exp(logpt)                        # pt uses the *unweighted* logpt (as in torch)
    one_m_pt = 1.0 - pt
    g = float(gamma)
    if g == 2.0:
        mod = one_m_pt * one_m_pt              # explicit square: no float-pow on the EUP
    elif g == 1.0:
        mod = one_m_pt
    elif g == 0.0:
        mod = jnp.ones_like(one_m_pt)
    else:
        mod = one_m_pt ** g
    focal_rows = -mod * (logpt * at)                                  # (TB, 1)
    if mask_rows:
        focal_rows = jnp.where(row_valid, focal_rows, 0.0)
    focal_part = jnp.sum(focal_rows)

    # ---- Distillation KL partial (exact nn.KLDivLoss pointwise formula) ------
    # Reference passes log_softmax(teacher/T) as the KLDivLoss *target* (log-probs),
    # so xlogy(target, target) is generally NaN; faithfully reproduced.
    s_zt = s_z * inv_t
    s_logp_t = s_zt - jnp.log(jnp.sum(jnp.exp(s_zt), axis=1, keepdims=True))  # (TB, Cp)

    t_max = jnp.max(t, axis=1, keepdims=True)
    t_zt = (t - t_max) * inv_t
    t_logp = t_zt - jnp.log(jnp.sum(jnp.exp(t_zt), axis=1, keepdims=True))    # (TB, Cp)

    xlogy_tt = jnp.where(t_logp == 0.0, 0.0, t_logp * jnp.log(t_logp))
    kl_elem = xlogy_tt - t_logp * s_logp_t
    if mask_cols and mask_rows:
        kl_elem = jnp.where((col < num_classes) & row_valid, kl_elem, 0.0)
    elif mask_cols:
        kl_elem = jnp.where(col < num_classes, kl_elem, 0.0)
    elif mask_rows:
        kl_elem = jnp.where(row_valid, kl_elem, 0.0)
    kd_part = jnp.sum(kl_elem)

    # ---- emit lane-dense per-tile partials: [0,0,0]=focal_sum, [0,0,1]=kd_sum --
    sub = lax.broadcasted_iota(jnp.int32, out_ref.shape, 1)
    lane = lax.broadcasted_iota(jnp.int32, out_ref.shape, 2)
    out_ref[...] = jnp.where((sub == 0) & (lane == 0), focal_part,
                             jnp.where((sub == 0) & (lane == 1), kd_part, 0.0))


def distillation_loss(student_outputs, teacher_outputs, targets, class_weights,
                      alpha=0.5, temperature=4.0, gamma=2.0):
    """Combined focal + distillation loss (scalar float32), matching the PyTorch module."""
    B, C = student_outputs.shape
    s_item = jnp.dtype(student_outputs.dtype).itemsize
    t_item = jnp.dtype(teacher_outputs.dtype).itemsize
    sublane = max(_sublane(student_outputs.dtype), _sublane(teacher_outputs.dtype))

    Cp = _round_up(C, 128)

    # Batch tile: large enough to amortize per-step overhead, small enough that the
    # double-buffered inputs stay well inside the default scoped-VMEM budget on every
    # generation (16 MiB v5e, 32 MiB v6e/v7x; v7x physical VMEM is only 64 MiB).
    vmem_budget = 12 * 1024 * 1024
    per_row = 2 * Cp * (s_item + t_item)           # 2 pipeline buffers x (student + teacher)
    tb = max(sublane, min(512, vmem_budget // max(per_row, 1)))
    tb = max(sublane, (tb // sublane) * sublane)
    tb = min(tb, _round_up(B, sublane))

    Bp = _round_up(B, tb)
    grid = (Bp // tb,)
    pad_b, pad_c = Bp - B, Cp - C

    # Pad on host in the ORIGINAL dtype (no f32 upcast -> half the DMA bytes for bf16).
    s_p = jnp.pad(student_outputs, ((0, pad_b), (0, pad_c)), constant_values=_NEG_PAD)
    t_p = jnp.pad(teacher_outputs, ((0, pad_b), (0, pad_c)), constant_values=_NEG_PAD)
    tgt_p = jnp.pad(targets.astype(jnp.int32).reshape(B, 1), ((0, pad_b), (0, 0)))
    cw_p = jnp.pad(class_weights.astype(jnp.float32).reshape(1, C), ((0, 0), (0, pad_c)))

    kernel = functools.partial(
        _distill_partial_kernel,
        temperature=float(temperature),
        gamma=float(gamma),
        num_rows_total=B,
        num_classes=C,
        block_rows=tb,
        mask_rows=(pad_b > 0),
        mask_cols=(pad_c > 0),
    )

    partials = pl.pallas_call(
        kernel,
        out_shape=jax.ShapeDtypeStruct((grid[0], 8, 128), jnp.float32),
        grid=grid,
        in_specs=[
            pl.BlockSpec((tb, Cp), lambda i: (i, 0)),   # student logits tile
            pl.BlockSpec((tb, Cp), lambda i: (i, 0)),   # teacher logits tile
            pl.BlockSpec((tb, 1), lambda i: (i, 0)),    # targets tile
            pl.BlockSpec((1, Cp), lambda i: (0, 0)),    # class weights (replicated)
        ],
        out_specs=pl.BlockSpec((1, 8, 128), lambda i: (i, 0, 0)),
        compiler_params=pltpu.CompilerParams(
            dimension_semantics=("parallel",),
        ),
        cost_estimate=pl.CostEstimate(
            flops=int(20 * Bp * Cp),
            transcendentals=int(5 * Bp * Cp),
            bytes_accessed=int(Bp * Cp * (s_item + t_item) + Bp * 4 + Cp * 4
                               + grid[0] * 8 * 128 * 4),
        ),
    )(s_p, t_p, tgt_p, cw_p)

    # Final scalar combine in plain JAX (tiny).
    focal_sum = jnp.sum(partials[:, 0, 0])
    kd_sum = jnp.sum(partials[:, 0, 1])
    focal = focal_sum / B                                   # FocalLoss reduction='mean'
    kd = (kd_sum / B) * (float(temperature) ** 2)           # KLDivLoss 'batchmean' * T^2
    return float(alpha) * focal + (1.0 - float(alpha)) * kd


if __name__ == "__main__":
    B, C = 8, 32  # batch_size, num_classes

    key = jax.random.PRNGKey(0)
    k1, k2, k3, k4 = jax.random.split(key, 4)
    student = jax.random.normal(k1, (B, C), jnp.float32)
    teacher = jax.random.normal(k2, (B, C), jnp.float32)
    targets = jax.random.randint(k3, (B,), 0, C, jnp.int32)
    # Deterministic "class_weights" parameter from the module __init__ (shape (num_classes,)).
    class_weights = jax.random.uniform(k4, (C,), jnp.float32, 0.5, 1.5)

    loss = distillation_loss(student, teacher, targets, class_weights,
                             alpha=0.5, temperature=4.0, gamma=2.0)
    jax.block_until_ready(loss)
    print("KERNEL_OK")
</pallas_src>

<mosaic_0001>
module attributes {stable_mosaic.version = 11 : i64} {
  func.func @_distill_partial_kernel(%arg0: i32, %arg1: memref<8x128xf32, #tpu.memory_space<vmem>>, %arg2: memref<8x128xf32, #tpu.memory_space<vmem>>, %arg3: memref<8x1xi32, #tpu.memory_space<vmem>>, %arg4: memref<1x128xf32, #tpu.memory_space<vmem>>, %arg5: memref<1x8x128xf32, #tpu.memory_space<vmem>>) attributes {dimension_semantics = [#tpu.dimension_semantics<parallel>], iteration_bounds = array<i64: 1>, scalar_prefetch = 0 : i64, scratch_operands = 0 : i64, tpu.core_type = #tpu.core_type<tc>, window_params = [{transform_indices = @transform_0, window_bounds = array<i64: 8, 128>}, {transform_indices = @transform_1, window_bounds = array<i64: 8, 128>}, {transform_indices = @transform_2, window_bounds = array<i64: 8, 1>}, {pipeline_mode = #tpu.pipeline_mode<synchronous>, transform_indices = @transform_3, window_bounds = array<i64: 1, 128>}, {transform_indices = @transform_4, window_bounds = array<i64: 1, 8, 128>}]} {
    %c0 = arith.constant 0 : index
    %c0_0 = arith.constant 0 : index
    %0 = vector.load %arg1[%c0, %c0_0] : memref<8x128xf32, #tpu.memory_space<vmem>>, vector<8x128xf32>
    %c0_1 = arith.constant 0 : index
    %c0_2 = arith.constant 0 : index
    %1 = vector.load %arg2[%c0_1, %c0_2] : memref<8x128xf32, #tpu.memory_space<vmem>>, vector<8x128xf32>
    %c0_3 = arith.constant 0 : index
    %c0_4 = arith.constant 0 : index
    %2 = vector.load %arg3[%c0_3, %c0_4] : memref<8x1xi32, #tpu.memory_space<vmem>>, vector<8x1xi32>
    %c0_5 = arith.constant 0 : index
    %c0_6 = arith.constant 0 : index
    %3 = vector.load %arg4[%c0_5, %c0_6] : memref<1x128xf32, #tpu.memory_space<vmem>>, vector<1x128xf32>
    %4 = tpu.iota {dimensions = array<i32: 1>} : vector<8x128xi32>
    %cst = arith.constant dense<0xFF800000> : vector<8xf32>
    %5 = vector.multi_reduction <maximumf>, %0, %cst [1] : vector<8x128xf32> to vector<8xf32>
    %6 = vector.shape_cast %5 : vector<8xf32> to vector<8x1xf32>
    %7 = vector.broadcast %6 : vector<8x1xf32> to vector<8x128xf32>
    %8 = arith.subf %0, %7 : vector<8x128xf32>
    %9 = math.exp %8 : vector<8x128xf32>
    %cst_7 = arith.constant dense<0.000000e+00> : vector<8xf32>
    %10 = vector.multi_reduction <add>, %9, %cst_7 [1] : vector<8x128xf32> to vector<8xf32>
    %11 = vector.shape_cast %10 : vector<8xf32> to vector<8x1xf32>
    %12 = math.log %11 : vector<8x1xf32>
    %13 = vector.broadcast %2 : vector<8x1xi32> to vector<8x128xi32>
    %14 = arith.cmpi eq, %4, %13 : vector<8x128xi32>
    %cst_8 = arith.constant 0.000000e+00 : f32
    %15 = vector.broadcast %cst_8 : f32 to vector<8x128xf32>
    %16 = arith.select %14, %8, %15 : vector<8x128xi1>, vector<8x128xf32>
    %cst_9 = arith.constant dense<0.000000e+00> : vector<8xf32>
    %17 = vector.multi_reduction <add>, %16, %cst_9 [1] : vector<8x128xf32> to vector<8xf32>
    %18 = vector.shape_cast %17 : vector<8xf32> to vector<8x1xf32>
    %cst_10 = arith.constant 0.000000e+00 : f32
    %19 = vector.shape_cast %3 : vector<1x128xf32> to vector<1x128xf32>
    %20 = vector.broadcast %19 : vector<1x128xf32> to vector<8x128xf32>
    %21 = vector.broadcast %cst_10 : f32 to vector<8x128xf32>
    %22 = arith.select %14, %20, %21 : vector<8x128xi1>, vector<8x128xf32>
    %cst_11 = arith.constant dense<0.000000e+00> : vector<8xf32>
    %23 = vector.multi_reduction <add>, %22, %cst_11 [1] : vector<8x128xf32> to vector<8xf32>
    %24 = vector.shape_cast %23 : vector<8xf32> to vector<8x1xf32>
    %25 = arith.subf %18, %12 : vector<8x1xf32>
    %26 = math.exp %25 : vector<8x1xf32>
    %cst_12 = arith.constant 1.000000e+00 : f32
    %27 = vector.broadcast %cst_12 : f32 to vector<8x1xf32>
    %28 = arith.subf %27, %26 : vector<8x1xf32>
    %29 = arith.mulf %28, %28 : vector<8x1xf32>
    %cst_13 = arith.constant 0.000000e+00 : f32
    %30 = vector.broadcast %cst_13 : f32 to vector<8x1xf32>
    %31 = arith.subf %30, %29 : vector<8x1xf32>
    %32 = arith.mulf %25, %24 : vector<8x1xf32>
    %33 = arith.mulf %31, %32 : vector<8x1xf32>
    %34 = vector.shape_cast %33 : vector<8x1xf32> to vector<1x8x1xf32>
    %cst_14 = arith.constant dense<0.000000e+00> : vector<1xf32>
    %35 = vector.multi_reduction <add>, %34, %cst_14 [1, 2] : vector<1x8x1xf32> to vector<1xf32>
    %36 = vector.shape_cast %35 : vector<1xf32> to vector<1x1x1xf32>
    %37 = vector.extract %36[0, 0, 0] : f32 from vector<1x1x1xf32>
    %cst_15 = arith.constant 2.500000e-01 : f32
    %38 = vector.broadcast %cst_15 : f32 to vector<8x128xf32>
    %39 = arith.mulf %8, %38 : vector<8x128xf32>
    %40 = math.exp %39 : vector<8x128xf32>
    %cst_16 = arith.constant dense<0.000000e+00> : vector<8xf32>
    %41 = vector.multi_reduction <add>, %40, %cst_16 [1] : vector<8x128xf32> to vector<8xf32>
    %42 = vector.shape_cast %41 : vector<8xf32> to vector<8x1xf32>
    %43 = math.log %42 : vector<8x1xf32>
    %44 = vector.broadcast %43 : vector<8x1xf32> to vector<8x128xf32>
    %45 = arith.subf %39, %44 : vector<8x128xf32>
    %cst_17 = arith.constant dense<0xFF800000> : vector<8xf32>
    %46 = vector.multi_reduction <maximumf>, %1, %cst_17 [1] : vector<8x128xf32> to vector<8xf32>
    %47 = vector.shape_cast %46 : vector<8xf32> to vector<8x1xf32>
    %48 = vector.broadcast %47 : vector<8x1xf32> to vector<8x128xf32>
    %49 = arith.subf %1, %48 : vector<8x128xf32>
    %cst_18 = arith.constant 2.500000e-01 : f32
    %50 = vector.broadcast %cst_18 : f32 to vector<8x128xf32>
    %51 = arith.mulf %49, %50 : vector<8x128xf32>
    %52 = math.exp %51 : vector<8x128xf32>
    %cst_19 = arith.constant dense<0.000000e+00> : vector<8xf32>
    %53 = vector.multi_reduction <add>, %52, %cst_19 [1] : vector<8x128xf32> to vector<8xf32>
    %54 = vector.shape_cast %53 : vector<8xf32> to vector<8x1xf32>
    %55 = math.log %54 : vector<8x1xf32>
    %56 = vector.broadcast %55 : vector<8x1xf32> to vector<8x128xf32>
    %57 = arith.subf %51, %56 : vector<8x128xf32>
    %cst_20 = arith.constant 0.000000e+00 : f32
    %58 = vector.broadcast %cst_20 : f32 to vector<8x128xf32>
    %59 = arith.cmpf oeq, %57, %58 : vector<8x128xf32>
    %60 = math.log %57 : vector<8x128xf32>
    %61 = arith.mulf %57, %60 : vector<8x128xf32>
    %cst_21 = arith.constant 0.000000e+00 : f32
    %62 = vector.broadcast %cst_21 : f32 to vector<8x128xf32>
    %63 = arith.select %59, %62, %61 : vector<8x128xi1>, vector<8x128xf32>
    %64 = arith.mulf %57, %45 : vector<8x128xf32>
    %65 = arith.subf %63, %64 : vector<8x128xf32>
    %c32_i32 = arith.constant 32 : i32
    %66 = vector.broadcast %c32_i32 : i32 to vector<8x128xi32>
    %67 = arith.cmpi slt, %4, %66 : vector<8x128xi32>
    %cst_22 = arith.constant 0.000000e+00 : f32
    %68 = vector.broadcast %cst_22 : f32 to vector<8x128xf32>
    %69 = arith.select %67, %65, %68 : vector<8x128xi1>, vector<8x128xf32>
    %70 = vector.shape_cast %69 : vector<8x128xf32> to vector<1x8x128xf32>
    %cst_23 = arith.constant dense<0.000000e+00> : vector<1xf32>
    %71 = vector.multi_reduction <add>, %70, %cst_23 [1, 2] : vector<1x8x128xf32> to vector<1xf32>
    %72 = vector.shape_cast %71 : vector<1xf32> to vector<1x1x1xf32>
    %73 = vector.extract %72[0, 0, 0] : f32 from vector<1x1x1xf32>
    %74 = tpu.iota {dimensions = array<i32: 1>} : vector<1x8x128xi32>
    %75 = tpu.iota {dimensions = array<i32: 2>} : vector<1x8x128xi32>
    %c0_i32 = arith.constant 0 : i32
    %76 = vector.broadcast %c0_i32 : i32 to vector<1x8x128xi32>
    %77 = arith.cmpi eq, %74, %76 : vector<1x8x128xi32>
    %c0_i32_24 = arith.constant 0 : i32
    %78 = vector.broadcast %c0_i32_24 : i32 to vector<1x8x128xi32>
    %79 = arith.cmpi eq, %75, %78 : vector<1x8x128xi32>
    %80 = arith.andi %77, %79 : vector<1x8x128xi1>
    %c0_i32_25 = arith.constant 0 : i32
    %81 = vector.broadcast %c0_i32_25 : i32 to vector<1x8x128xi32>
    %82 = arith.cmpi eq, %74, %81 : vector<1x8x128xi32>
    %c1_i32 = arith.constant 1 : i32
    %83 = vector.broadcast %c1_i32 : i32 to vector<1x8x128xi32>
    %84 = arith.cmpi eq, %75, %83 : vector<1x8x128xi32>
    %85 = arith.andi %82, %84 : vector<1x8x128xi1>
    %cst_26 = arith.constant 0.000000e+00 : f32
    %86 = vector.broadcast %73 : f32 to vector<1x8x128xf32>
    %87 = vector.broadcast %cst_26 : f32 to vector<1x8x128xf32>
    %88 = arith.select %85, %86, %87 : vector<1x8x128xi1>, vector<1x8x128xf32>
    %89 = vector.broadcast %37 : f32 to vector<1x8x128xf32>
    %90 = arith.select %80, %89, %88 : vector<1x8x128xi1>, vector<1x8x128xf32>
    %c0_27 = arith.constant 0 : index
    %c0_28 = arith.constant 0 : index
    %c0_29 = arith.constant 0 : index
    %91 = vector.load %arg5[%c0_27, %c0_28, %c0_29] : memref<1x8x128xf32, #tpu.memory_space<vmem>>, vector<1x8x128xf32>
    tpu.vector_store %arg5[%c0_27, %c0_28, %c0_29], %90 {strides = array<i32>} : memref<1x8x128xf32, #tpu.memory_space<vmem>>, vector<1x8x128xf32>,
    return
  }
  func.func @transform_0(%arg0: i32) -> (i32, i32) {
    %c0_i32 = arith.constant 0 : i32
    %c0_i32_0 = arith.constant 0 : i32
    return %arg0, %c0_i32 : i32, i32
  }
  func.func @transform_1(%arg0: i32) -> (i32, i32) {
    %c0_i32 = arith.constant 0 : i32
    %c0_i32_0 = arith.constant 0 : i32
    return %arg0, %c0_i32 : i32, i32
  }
  func.func @transform_2(%arg0: i32) -> (i32, i32) {
    %c0_i32 = arith.constant 0 : i32
    %c0_i32_0 = arith.constant 0 : i32
    return %arg0, %c0_i32 : i32, i32
  }
  func.func @transform_3(%arg0: i32) -> (i32, i32) {
    %c0_i32 = arith.constant 0 : i32
    %c0_i32_0 = arith.constant 0 : i32
    %c0_i32_1 = arith.constant 0 : i32
    return %c0_i32, %c0_i32_0 : i32, i32
  }
  func.func @transform_4(%arg0: i32) -> (i32, i32, i32) {
    %c0_i32 = arith.constant 0 : i32
    %c0_i32_0 = arith.constant 0 : i32
    %c0_i32_1 = arith.constant 0 : i32
    return %arg0, %c0_i32, %c0_i32_0 : i32, i32, i32
  }
}

</mosaic_0001>

<llo_original>
// kernel: tpu_custom_call.1
$region0: #{tpu_custom_call.1}
  #allocation0 [shape = 'u32[]', space=smem, size = 0x4, offset = 0x4, fixed_abs, tag = 'smem constant byte address 0x4 - core index']
  #allocation1 [shape = 'u32[144,128]{1,0:T(1,128)}', space=vmem, size = 0x12000, scoped, tag = 'internal scratch']
  %s0 = inlined_call_operand.vmem [shape: f32[8,128], index: 0, kind: input, shape index: {}]
  %s1 = inlined_call_operand.hbm [shape: f32[8,128], index: 1, kind: input, shape index: {}]
  %s2 = inlined_call_operand.vmem [shape: s32[8,1], index: 2, kind: input, shape index: {}]
  %s3 = inlined_call_operand.vmem [shape: f32[1,128], index: 3, kind: input, shape index: {}]
  %s4 = inlined_call_operand.hbm [shape: f32[1,8,128], index: 4, kind: output, shape index: {}]
  %s5 = sld [smem:[#allocation0]]
  $region30: #{tpu_custom_call.1} parent=0
    _
  %s7 = ssub.s32 1, %s5
  %s8 = scalar_select 0, %s7, %s5
  $region1: #{tpu_custom_call.1} parent=0
    #allocation2 [shape = 'u8[4096]{0}', space=vmem, size = 0x1000, scoped, tag = 'input window, operand 1, single buffered']
    #allocation3 [shape = 's32[1]{0}', space=sflag, size = 0x4, scoped, tag = 'scoped memory for tpu_custom_call.1']
    #allocation4 [shape = 's32[1]{0}', space=sflag, size = 0x4, scoped, tag = 'scoped memory for tpu_custom_call.1']
    #allocation5 [shape = 'u8[4096]{0}', space=vmem, size = 0x1000, scoped, tag = 'output window, operand 0, single buffered']
    %9 = vsyncpa [#allocation3], 0
    %10 = vsyncpa [#allocation4], 0
    // Predicated region
    $region2: #{tpu_custom_call.1} parent=1 // pred_check
      _
    $region3: #{tpu_custom_call.1} parent=1 // pred_check_branch
      %12 = sbr.rel (0) target = $region5
    $region4: #{tpu_custom_call.1} parent=1 // pred_region
      _
    $region5: #{tpu_custom_call.1} parent=1 // pred_fallthru
      _
    // Predicated region
    $region6: #{tpu_custom_call.1} parent=1 // pred_check
      _
    $region7: #{tpu_custom_call.1} parent=1 // pred_check_branch
      %14 = sbr.rel (0) target = $region9
    $region8: #{tpu_custom_call.1} parent=1 // pred_region
      %s16 = ssub.s32 128, 128
      %17 = vsyncadd [#allocation3], %s16
      %s19 = sshll.u32 [#allocation2], 4
      %s20 = int_to_ptr.vmem [resolvable:$true] %s19
      %22 = dma.hbm_to_vmem [thread:$0]  %s1, 128, %s20, [#allocation3]
    $region9: #{tpu_custom_call.1} parent=1 // pred_fallthru
      _
    // Predicated region
    $region10: #{tpu_custom_call.1} parent=1 // pred_check
      _
    $region11: #{tpu_custom_call.1} parent=1 // pred_check_branch
      %24 = sbr.rel (0) target = $region13
    $region12: #{tpu_custom_call.1} parent=1 // pred_region
      _
    $region13: #{tpu_custom_call.1} parent=1 // pred_fallthru
      _
    // Predicated region
    $region14: #{tpu_custom_call.1} parent=1 // pred_check
      _
    $region15: #{tpu_custom_call.1} parent=1 // pred_check_branch
      %26 = sbr.rel (0) target = $region17
    $region16: #{tpu_custom_call.1} parent=1 // pred_region
      _
    $region17: #{tpu_custom_call.1} parent=1 // pred_fallthru
      _
    // Predicated region
    $region18: #{tpu_custom_call.1} parent=1 // pred_check
      _
    $region19: #{tpu_custom_call.1} parent=1 // pred_check_branch
      %28 = sbr.rel (0) target = $region21
    $region20: #{tpu_custom_call.1} parent=1 // pred_region
      %29 = dma.done [#allocation3], 128
    $region21: #{tpu_custom_call.1} parent=1 // pred_fallthru
      _
    %v30 = vld [vmem:[%s0] sm:$0xff]
    %v31 = vld [vmem:[#allocation2] sm:$0xff]
    %v32 = vld [vmem:[%s2] sm:$0xff]
    %v33 = vld [vmem:[%s3] sm:$0x1]
    %v34 = vlaneseq
    %v35 = vand.u32 %v34, 127
    %36 = vmax.xlane.f32.xlu0 %v30
    %v37 = vpop.xlane.xlu0 %36
    %v38 = vsub.f32 %v30, %v37
    %v39 = vmul.f32 %v38, 1.442695
    %v40 = vpow.pop %v39
    %41 = vadd.xlane.f32.xlu0 %v40
    %v42 = vpop.xlane.xlu0 %41
    %v43 = vlog2.pop %v42
    %v44 = vmul.f32 %v43, 0.6931472
    %45 = vset.pattern.permute.xlu0 0
    %46 = vperm.xlu0 %45, %v32
    %v47 = vpop.permute.xlu0 %46
    %vm48 = vcmp.eq.s32.totalorder %v35, %v47
    %v49 = vsel %vm48, %v38, 0.0
    %50 = vadd.xlane.f32.xlu0 %v49
    %v51 = vpop.xlane.xlu0 %50
    %v53 = vlaneseq
    %v54 = vshrl.u32 %v53, 7
    %v55 = vsub.s32 0, %v54
    %v56 = vrot.slane %v33, %v55
    %v58 = vsel %vm48, %v56, 0.0
    %59 = vadd.xlane.f32.xlu0 %v58
    %v60 = vpop.xlane.xlu0 %59
    %v61 = vsub.f32 %v51, %v44
    %v62 = vmul.f32 %v61, 1.442695
    %v63 = vpow.pop %v62
    %v64 = vsub.f32 1.0, %v63
    %v65 = vmul.f32 %v64, %v64
    %v66 = vsub.f32 0.0, %v65
    %v67 = vmul.f32 %v61, %v60
    %v68 = vmul.f32 %v66, %v67
    %vm69 = vcmask 7168
    %v70 = vsel %vm69, %v68, 0.0
    %71 = vadd.xlane.f32.xlu0 %v70
    %v72 = vpop.xlane.xlu0 %71
    %v73 = vrot.slane %v72, 4
    %v74 = vadd.f32 %v72, %v73
    %v75 = vrot.slane %v74, 2
    %v76 = vadd.f32 %v74, %v75
    %v77 = vrot.slane %v76, 1
    %v78 = vadd.f32 %v76, %v77
    %s79 = vtos %v78
    %v80 = vmul.f32 %v38, 0.25
    %v81 = vmul.f32 %v80, 1.442695
    %v82 = vpow.pop %v81
    %83 = vadd.xlane.f32.xlu0 %v82
    %v84 = vpop.xlane.xlu0 %83
    %v85 = vlog2.pop %v84
    %v86 = vmul.f32 %v85, 0.6931472
    %v87 = vsub.f32 %v80, %v86
    %88 = vmax.xlane.f32.xlu0 %v31
    %v89 = vpop.xlane.xlu0 %88
    %v90 = vsub.f32 %v31, %v89
    %v91 = vmul.f32 %v90, 0.25
    %v92 = vmul.f32 %v91, 1.442695
    %v93 = vpow.pop %v92
    %94 = vadd.xlane.f32.xlu0 %v93
    %v95 = vpop.xlane.xlu0 %94
    %v96 = vlog2.pop %v95
    %v97 = vmul.f32 %v96, 0.6931472
    %v98 = vsub.f32 %v91, %v97
    %vm99 = vcmp.eq.f32.partialorder %v98, 0.0
    %v100 = vlog2.pop %v98
    %v101 = vmul.f32 %v100, 0.6931472
    %v102 = vmul.f32 %v98, %v101
    %v103 = vsel %vm99, 0.0, %v102
    %v104 = vmul.f32 %v98, %v87
    %v105 = vsub.f32 %v103, %v104
    %vm106 = vcmp.lt.s32.totalorder %v35, 32
    %v107 = vsel %vm106, %v105, 0.0
    %108 = vadd.xlane.f32.xlu0 %v107
    %v109 = vpop.xlane.xlu0 %108
    %v110 = vrot.slane %v109, 4
    %v111 = vadd.f32 %v109, %v110
    %v112 = vrot.slane %v111, 2
    %v113 = vadd.f32 %v111, %v112
    %v114 = vrot.slane %v113, 1
    %v115 = vadd.f32 %v113, %v114
    %s116 = vtos %v115
    %v117 = vlaneseq
    %v118 = vshrl.u32 %v117, 7
    %vm119 = vcmp.eq.s32.totalorder %v118, 0
    %vm120 = vcmp.eq.s32.totalorder %v35, 0
    %vm121 = vmand %vm119, %vm120
    %vm122 = vcmp.eq.s32.totalorder %v35, 1
    %vm123 = vmand %vm119, %vm122
    %v124 = vstv %s116
    %v125 = vsel %vm123, %v124, 0.0
    %v126 = vstv %s79
    %v127 = vsel %vm121, %v126, %v125
    %128 = vst [vmem:[#allocation5] sm:$0xff] %v127
    // Predicated region
    $region22: #{tpu_custom_call.1} parent=1 // pred_check
      _
    $region23: #{tpu_custom_call.1} parent=1 // pred_check_branch
      %130 = sbr.rel (0) target = $region25
    $region24: #{tpu_custom_call.1} parent=1 // pred_region
      %s132 = ssub.s32 128, 128
      %133 = vsyncadd [#allocation4], %s132
      %s135 = sshll.u32 [#allocation5], 4
      %s136 = int_to_ptr.vmem [resolvable:$true] %s135
      %138 = dma.vmem_to_hbm [thread:$0]  %s136, 128, %s4, [#allocation4]
    $region25: #{tpu_custom_call.1} parent=1 // pred_fallthru
      _
    // Predicated region
    $region26: #{tpu_custom_call.1} parent=1 // pred_check
      _
    $region27: #{tpu_custom_call.1} parent=1 // pred_check_branch
      %140 = sbr.rel (0) target = $region29
    $region28: #{tpu_custom_call.1} parent=1 // pred_region
      %141 = dma.done [#allocation4], 128
    $region29: #{tpu_custom_call.1} parent=1 // pred_fallthru
      _
    %142 = vsyncpa [#allocation3], 1
    %143 = vsyncpa [#allocation4], 1

</llo_original>
